<compile_context>
chip_gen: v7x
topology: tpu7x:2x2x1
jax: 0.10.0
libtpu: 0.0.40
codegen_flags: <defaults>
</compile_context>

<pallas_src>
import jax
import jax.numpy as jnp
from jax.experimental import pallas as pl
from jax.experimental.pallas import tpu as pltpu


def _round_up(x, m):
    return ((x + m - 1) // m) * m


def _mlp_kernel(x_ref, w1_ref, b1_ref, w2_ref, b2_ref, o_ref):
    # x_ref:  (TM, Hp)    bf16 row tile
    # w1_ref: (Hp, HIDp)  bf16   b1_ref: (1, HIDp) f32
    # w2_ref: (HIDp, Cp)  bf16   b2_ref: (1, Cp)   f32
    # o_ref:  (TM, Cp)    f32
    h = jnp.dot(x_ref[...], w1_ref[...], preferred_element_type=jnp.float32)
    h = h + b1_ref[...]
    # TODO(synk): torch.nn.GELU defaults to the exact erf formulation; the
    # tanh approximation is used here for the EUP fast path (tiny numeric
    # delta, well inside the bf16-matmul error floor).
    h = jax.nn.gelu(h, approximate=True)
    out = jnp.dot(h.astype(w2_ref.dtype), w2_ref[...],
                  preferred_element_type=jnp.float32)
    out = out + b2_ref[...]
    o_ref[...] = out.astype(o_ref.dtype)


def _vmem_estimate_bytes(tm, hp, hidp, cp):
    bf2, f4 = 2, 4
    x_bytes = 2 * tm * hp * bf2                       # double-buffered x tile
    out_bytes = 2 * tm * cp * f4                      # double-buffered out tile
    w_bytes = 2 * (hp * hidp * bf2 + hidp * cp * bf2 + hidp * f4 + cp * f4)
    interm = tm * hidp * f4 + tm * cp * f4            # h / out temporaries
    return x_bytes + out_bytes + w_bytes + interm


def resumable_model_forward(x, params, *, tm=256):
    """x: (B, T, H) float32 -> logits (B, T, C) float32."""
    w1, b1, w2, b2 = params
    B, T, H = x.shape
    HID = w1.shape[1]
    C = w2.shape[1]
    BT = B * T

    # Lane-dense padding of feature dims.
    Hp = _round_up(H, 128)
    HIDp = _round_up(HID, 128)
    Cp = _round_up(C, 128)

    # Row tile: multiple of 16 (bf16 sublane packing), no larger than needed.
    tm = min(tm, _round_up(BT, 16))
    tm = _round_up(tm, 16)
    BTp = _round_up(BT, tm)

    # Wrapper-side casts + zero padding (exact; see header comment).
    x2d = jnp.pad(x.reshape(BT, H).astype(jnp.bfloat16),
                  ((0, BTp - BT), (0, Hp - H)))
    w1p = jnp.pad(w1.astype(jnp.bfloat16), ((0, Hp - H), (0, HIDp - HID)))
    b1p = jnp.pad(b1.astype(jnp.float32), ((0, 0), (0, HIDp - HID)))
    w2p = jnp.pad(w2.astype(jnp.bfloat16), ((0, HIDp - HID), (0, Cp - C)))
    b2p = jnp.pad(b2.astype(jnp.float32), ((0, 0), (0, Cp - C)))

    # Only raise the scoped VMEM limit when the footprint estimate demands it.
    est = _vmem_estimate_bytes(tm, Hp, HIDp, Cp)
    vmem_limit = None
    if est * 3 // 2 > (24 << 20):
        vmem_limit = min(int(est * 3 // 2), 100 << 20)

    grid = (BTp // tm,)
    out2d = pl.pallas_call(
        _mlp_kernel,
        out_shape=jax.ShapeDtypeStruct((BTp, Cp), jnp.float32),
        grid=grid,
        in_specs=[
            pl.BlockSpec((tm, Hp), lambda i: (i, 0)),      # x row tile
            pl.BlockSpec((Hp, HIDp), lambda i: (0, 0)),    # W1 (VMEM-resident)
            pl.BlockSpec((1, HIDp), lambda i: (0, 0)),     # b1
            pl.BlockSpec((HIDp, Cp), lambda i: (0, 0)),    # W2 (VMEM-resident)
            pl.BlockSpec((1, Cp), lambda i: (0, 0)),       # b2
        ],
        out_specs=pl.BlockSpec((tm, Cp), lambda i: (i, 0)),
        compiler_params=pltpu.CompilerParams(
            dimension_semantics=("parallel",),             # shards rows on v7x 2-TC
            vmem_limit_bytes=vmem_limit,
        ),
    )(x2d, w1p, b1p, w2p, b2p)

    return out2d[:BT, :C].reshape(B, T, C)


def init_params(key, H, HID, C):
    k1, k2, k3, k4 = jax.random.split(key, 4)
    w1 = jax.random.normal(k1, (H, HID), jnp.float32) * (1.0 / jnp.sqrt(H))
    b1 = jax.random.normal(k3, (1, HID), jnp.float32) * 0.1
    w2 = jax.random.normal(k2, (HID, C), jnp.float32) * (1.0 / jnp.sqrt(HID))
    b2 = jax.random.normal(k4, (1, C), jnp.float32) * 0.1
    return (w1, b1, w2, b2)


if __name__ == "__main__":
    # Small shapes consistent with the (B, T, C) logits contract of the module.
    B, T, H, HID, C = 2, 8, 32, 64, 16

    key = jax.random.PRNGKey(0)
    kx, kp = jax.random.split(key)
    x = jax.random.normal(kx, (B, T, H), jnp.float32)
    params = init_params(kp, H, HID, C)

    logits = resumable_model_forward(x, params)
    logits = jax.block_until_ready(logits)

    # Pure-JAX reference using the same bf16-matmul / f32-accumulate recipe.
    w1, b1, w2, b2 = params
    xb = x.reshape(B * T, H).astype(jnp.bfloat16)
    h = jnp.dot(xb, w1.astype(jnp.bfloat16),
                preferred_element_type=jnp.float32) + b1
    h = jax.nn.gelu(h, approximate=True)
    ref = (jnp.dot(h.astype(jnp.bfloat16), w2.astype(jnp.bfloat16),
                   preferred_element_type=jnp.float32) + b2).reshape(B, T, C)

    assert logits.shape == (B, T, C)
    assert jnp.allclose(logits, ref, atol=5e-3, rtol=5e-3), (
        float(jnp.max(jnp.abs(logits - ref))))

    # TODO(synk): ResumableModel's training/checkpoint/logging machinery
    # (optimizer steps, torch.save/load, RNG-state save/restore, DataLoader
    # resume sampling, metric logging) has no Pallas equivalent; only the
    # forward compute path is implemented here.
    print("KERNEL_OK")
</pallas_src>

<mosaic_0001>
module attributes {stable_mosaic.version = 11 : i64} {
  func.func @_mlp_kernel(%arg0: i32, %arg1: memref<16x128xbf16, #tpu.memory_space<vmem>>, %arg2: memref<128x128xbf16, #tpu.memory_space<vmem>>, %arg3: memref<1x128xf32, #tpu.memory_space<vmem>>, %arg4: memref<128x128xbf16, #tpu.memory_space<vmem>>, %arg5: memref<1x128xf32, #tpu.memory_space<vmem>>, %arg6: memref<16x128xf32, #tpu.memory_space<vmem>>) attributes {dimension_semantics = [#tpu.dimension_semantics<parallel>], iteration_bounds = array<i64: 1>, scalar_prefetch = 0 : i64, scratch_operands = 0 : i64, tpu.core_type = #tpu.core_type<tc>, window_params = [{transform_indices = @transform_0, window_bounds = array<i64: 16, 128>}, {pipeline_mode = #tpu.pipeline_mode<synchronous>, transform_indices = @transform_1, window_bounds = array<i64: 128, 128>}, {pipeline_mode = #tpu.pipeline_mode<synchronous>, transform_indices = @transform_2, window_bounds = array<i64: 1, 128>}, {pipeline_mode = #tpu.pipeline_mode<synchronous>, transform_indices = @transform_3, window_bounds = array<i64: 128, 128>}, {pipeline_mode = #tpu.pipeline_mode<synchronous>, transform_indices = @transform_4, window_bounds = array<i64: 1, 128>}, {transform_indices = @transform_5, window_bounds = array<i64: 16, 128>}]} {
    %c0 = arith.constant 0 : index
    %c0_0 = arith.constant 0 : index
    %0 = vector.load %arg1[%c0, %c0_0] : memref<16x128xbf16, #tpu.memory_space<vmem>>, vector<16x128xbf16>
    %c0_1 = arith.constant 0 : index
    %c0_2 = arith.constant 0 : index
    %1 = vector.load %arg2[%c0_1, %c0_2] : memref<128x128xbf16, #tpu.memory_space<vmem>>, vector<128x128xbf16>
    %cst = arith.constant dense<0.000000e+00> : vector<16x128xf32>
    %2 = tpu.matmul %0, %1, %cst {dimension_numbers = #tpu.dot_dimension_numbers<[1], [0], [0], [1], [0, 0, 1, 1], [], []>} : vector<16x128xbf16>, vector<128x128xbf16>, vector<16x128xf32> -> vector<16x128xf32>
    %c0_3 = arith.constant 0 : index
    %c0_4 = arith.constant 0 : index
    %3 = vector.load %arg3[%c0_3, %c0_4] : memref<1x128xf32, #tpu.memory_space<vmem>>, vector<1x128xf32>
    %4 = vector.broadcast %3 : vector<1x128xf32> to vector<16x128xf32>
    %5 = arith.addf %2, %4 : vector<16x128xf32>
    %6 = arith.mulf %5, %5 : vector<16x128xf32>
    %7 = arith.mulf %5, %6 : vector<16x128xf32>
    %cst_5 = arith.constant 4.471500e-02 : f32
    %8 = vector.broadcast %cst_5 : f32 to vector<16x128xf32>
    %9 = arith.mulf %8, %7 : vector<16x128xf32>
    %10 = arith.addf %5, %9 : vector<16x128xf32>
    %cst_6 = arith.constant 0.797884583 : f32
    %11 = vector.broadcast %cst_6 : f32 to vector<16x128xf32>
    %12 = arith.mulf %11, %10 : vector<16x128xf32>
    %13 = math.tanh %12 : vector<16x128xf32>
    %cst_7 = arith.constant 1.000000e+00 : f32
    %14 = vector.broadcast %cst_7 : f32 to vector<16x128xf32>
    %15 = arith.addf %14, %13 : vector<16x128xf32>
    %cst_8 = arith.constant 5.000000e-01 : f32
    %16 = vector.broadcast %cst_8 : f32 to vector<16x128xf32>
    %17 = arith.mulf %16, %15 : vector<16x128xf32>
    %18 = arith.mulf %5, %17 : vector<16x128xf32>
    %19 = arith.truncf %18 : vector<16x128xf32> to vector<16x128xbf16>
    %c0_9 = arith.constant 0 : index
    %c0_10 = arith.constant 0 : index
    %20 = vector.load %arg4[%c0_9, %c0_10] : memref<128x128xbf16, #tpu.memory_space<vmem>>, vector<128x128xbf16>
    %cst_11 = arith.constant dense<0.000000e+00> : vector<16x128xf32>
    %21 = tpu.matmul %19, %20, %cst_11 {dimension_numbers = #tpu.dot_dimension_numbers<[1], [0], [0], [1], [0, 0, 1, 1], [], []>} : vector<16x128xbf16>, vector<128x128xbf16>, vector<16x128xf32> -> vector<16x128xf32>
    %c0_12 = arith.constant 0 : index
    %c0_13 = arith.constant 0 : index
    %22 = vector.load %arg5[%c0_12, %c0_13] : memref<1x128xf32, #tpu.memory_space<vmem>>, vector<1x128xf32>
    %23 = vector.broadcast %22 : vector<1x128xf32> to vector<16x128xf32>
    %24 = arith.addf %21, %23 : vector<16x128xf32>
    %c0_14 = arith.constant 0 : index
    %c0_15 = arith.constant 0 : index
    %25 = vector.load %arg6[%c0_14, %c0_15] : memref<16x128xf32, #tpu.memory_space<vmem>>, vector<16x128xf32>
    tpu.vector_store %arg6[%c0_14, %c0_15], %24 {strides = array<i32>} : memref<16x128xf32, #tpu.memory_space<vmem>>, vector<16x128xf32>,
    return
  }
  func.func @transform_0(%arg0: i32) -> (i32, i32) {
    %c0_i32 = arith.constant 0 : i32
    %c0_i32_0 = arith.constant 0 : i32
    return %arg0, %c0_i32 : i32, i32
  }
  func.func @transform_1(%arg0: i32) -> (i32, i32) {
    %c0_i32 = arith.constant 0 : i32
    %c0_i32_0 = arith.constant 0 : i32
    %c0_i32_1 = arith.constant 0 : i32
    return %c0_i32, %c0_i32_0 : i32, i32
  }
  func.func @transform_2(%arg0: i32) -> (i32, i32) {
    %c0_i32 = arith.constant 0 : i32
    %c0_i32_0 = arith.constant 0 : i32
    %c0_i32_1 = arith.constant 0 : i32
    return %c0_i32, %c0_i32_0 : i32, i32
  }
  func.func @transform_3(%arg0: i32) -> (i32, i32) {
    %c0_i32 = arith.constant 0 : i32
    %c0_i32_0 = arith.constant 0 : i32
    %c0_i32_1 = arith.constant 0 : i32
    return %c0_i32, %c0_i32_0 : i32, i32
  }
  func.func @transform_4(%arg0: i32) -> (i32, i32) {
    %c0_i32 = arith.constant 0 : i32
    %c0_i32_0 = arith.constant 0 : i32
    %c0_i32_1 = arith.constant 0 : i32
    return %c0_i32, %c0_i32_0 : i32, i32
  }
  func.func @transform_5(%arg0: i32) -> (i32, i32) {
    %c0_i32 = arith.constant 0 : i32
    %c0_i32_0 = arith.constant 0 : i32
    return %arg0, %c0_i32 : i32, i32
  }
}

</mosaic_0001>

<llo_original>
// kernel: tpu_custom_call.1
$region0: #{tpu_custom_call.1}
  #allocation0 [shape = 'u32[]', space=smem, size = 0x4, offset = 0x4, fixed_abs, tag = 'smem constant byte address 0x4 - core index']
  #allocation1 [shape = 'u32[144,128]{1,0:T(1,128)}', space=vmem, size = 0x12000, scoped, tag = 'internal scratch']
  %s0 = inlined_call_operand.hbm [shape: bf16[16,128], index: 0, kind: input, shape index: {}]
  %s1 = inlined_call_operand.hbm [shape: bf16[128,128], index: 1, kind: input, shape index: {}]
  %s2 = inlined_call_operand.vmem [shape: f32[1,128], index: 2, kind: input, shape index: {}]
  %s3 = inlined_call_operand.hbm [shape: bf16[128,128], index: 3, kind: input, shape index: {}]
  %s4 = inlined_call_operand.vmem [shape: f32[1,128], index: 4, kind: input, shape index: {}]
  %s5 = inlined_call_operand.hbm [shape: f32[16,128], index: 5, kind: output, shape index: {}]
  %s6 = sld [smem:[#allocation0]]
  $region42: #{tpu_custom_call.1} parent=0
    _
  %s8 = ssub.s32 1, %s6
  %s9 = scalar_select 0, %s8, %s6
  $region1: #{tpu_custom_call.1} parent=0
    #allocation2 [shape = 'u8[4096]{0}', space=vmem, size = 0x1000, scoped, tag = 'input window, operand 0, single buffered']
    #allocation3 [shape = 's32[1]{0}', space=sflag, size = 0x4, scoped, tag = 'scoped memory for tpu_custom_call.1']
    #allocation4 [shape = 's32[1]{0}', space=sflag, size = 0x4, scoped, tag = 'scoped memory for tpu_custom_call.1']
    #allocation5 [shape = 'u8[32768]{0}', space=vmem, size = 0x8000, scoped, tag = 'input window, operand 1, single buffered']
    #allocation6 [shape = 's32[1]{0}', space=sflag, size = 0x4, scoped, tag = 'scoped memory for tpu_custom_call.1']
    #allocation7 [shape = 'u8[32768]{0}', space=vmem, size = 0x8000, scoped, tag = 'input window, operand 3, single buffered']
    #allocation8 [shape = 'u8[8192]{0}', space=vmem, size = 0x2000, scoped, tag = 'output window, operand 0, single buffered']
    %10 = vsyncpa [#allocation3], 0
    %11 = vsyncpa [#allocation6], 0
    %12 = vsyncpa [#allocation4], 0
    // Predicated region
    $region2: #{tpu_custom_call.1} parent=1 // pred_check
      _
    $region3: #{tpu_custom_call.1} parent=1 // pred_check_branch
      %14 = sbr.rel (0) target = $region5
    $region4: #{tpu_custom_call.1} parent=1 // pred_region
      %s16 = ssub.s32 128, 128
      %17 = vsyncadd [#allocation3], %s16
      %s18 = sshll.u32 [#allocation2], 4
      %s19 = int_to_ptr.vmem [resolvable:$true] %s18
      %24 = dma.hbm_to_vmem [thread:$0]  %s0, 128, %s19, [#allocation3], 64, 64, 4
    $region5: #{tpu_custom_call.1} parent=1 // pred_fallthru
      _
    // Predicated region
    $region6: #{tpu_custom_call.1} parent=1 // pred_check
      _
    $region7: #{tpu_custom_call.1} parent=1 // pred_check_branch
      %26 = sbr.rel (0) target = $region9
    $region8: #{tpu_custom_call.1} parent=1 // pred_region
      %s28 = ssub.s32 1024, 1024
      %29 = vsyncadd [#allocation6], %s28
      %s30 = sshll.u32 [#allocation5], 4
      %s31 = int_to_ptr.vmem [resolvable:$true] %s30
      %36 = dma.hbm_to_vmem [thread:$0]  %s1, 1024, %s31, [#allocation6], 64, 64, 4
    $region9: #{tpu_custom_call.1} parent=1 // pred_fallthru
      _
    // Predicated region
    $region10: #{tpu_custom_call.1} parent=1 // pred_check
      _
    $region11: #{tpu_custom_call.1} parent=1 // pred_check_branch
      %38 = sbr.rel (0) target = $region13
    $region12: #{tpu_custom_call.1} parent=1 // pred_region
      _
    $region13: #{tpu_custom_call.1} parent=1 // pred_fallthru
      _
    // Predicated region
    $region14: #{tpu_custom_call.1} parent=1 // pred_check
      _
    $region15: #{tpu_custom_call.1} parent=1 // pred_check_branch
      %40 = sbr.rel (0) target = $region17
    $region16: #{tpu_custom_call.1} parent=1 // pred_region
      %s42 = ssub.s32 1024, 1024
      %43 = vsyncadd [#allocation6], %s42
      %s44 = sshll.u32 [#allocation7], 4
      %s45 = int_to_ptr.vmem [resolvable:$true] %s44
      %50 = dma.hbm_to_vmem [thread:$0]  %s3, 1024, %s45, [#allocation6], 64, 64, 4
    $region17: #{tpu_custom_call.1} parent=1 // pred_fallthru
      _
    // Predicated region
    $region18: #{tpu_custom_call.1} parent=1 // pred_check
      _
    $region19: #{tpu_custom_call.1} parent=1 // pred_check_branch
      %52 = sbr.rel (0) target = $region21
    $region20: #{tpu_custom_call.1} parent=1 // pred_region
      _
    $region21: #{tpu_custom_call.1} parent=1 // pred_fallthru
      _
    // Predicated region
    $region22: #{tpu_custom_call.1} parent=1 // pred_check
      _
    $region23: #{tpu_custom_call.1} parent=1 // pred_check_branch
      %54 = sbr.rel (0) target = $region25
    $region24: #{tpu_custom_call.1} parent=1 // pred_region
      %55 = dma.done [#allocation3], 128
    $region25: #{tpu_custom_call.1} parent=1 // pred_fallthru
      _
    // Predicated region
    $region26: #{tpu_custom_call.1} parent=1 // pred_check
      _
    $region27: #{tpu_custom_call.1} parent=1 // pred_check_branch
      %57 = sbr.rel (0) target = $region29
    $region28: #{tpu_custom_call.1} parent=1 // pred_region
      %58 = dma.done [#allocation6], 1024
    $region29: #{tpu_custom_call.1} parent=1 // pred_fallthru
      _
    // Predicated region
    $region30: #{tpu_custom_call.1} parent=1 // pred_check
      _
    $region31: #{tpu_custom_call.1} parent=1 // pred_check_branch
      %60 = sbr.rel (0) target = $region33
    $region32: #{tpu_custom_call.1} parent=1 // pred_region
      %61 = dma.done [#allocation6], 1024
    $region33: #{tpu_custom_call.1} parent=1 // pred_fallthru
      _
    %v63 = vld [vmem:[#allocation2] sm:$0xf]
    %v64 = vld [vmem:[#allocation2 + $0x4] sm:$0xf]
    %v65 = vld [vmem:[#allocation5] sm:$0xf]
    %v66 = vld [vmem:[#allocation5 + $0x4] sm:$0xf]
    %v67 = vld [vmem:[#allocation5 + $0x8] sm:$0xf]
    %v68 = vld [vmem:[#allocation5 + $0xc] sm:$0xf]
    %v69 = vld [vmem:[#allocation5 + $0x10] sm:$0xf]
    %v70 = vld [vmem:[#allocation5 + $0x14] sm:$0xf]
    %v71 = vld [vmem:[#allocation5 + $0x18] sm:$0xf]
    %v72 = vld [vmem:[#allocation5 + $0x1c] sm:$0xf]
    %v73 = vld [vmem:[#allocation5 + $0x20] sm:$0xf]
    %v74 = vld [vmem:[#allocation5 + $0x24] sm:$0xf]
    %v75 = vld [vmem:[#allocation5 + $0x28] sm:$0xf]
    %v76 = vld [vmem:[#allocation5 + $0x2c] sm:$0xf]
    %v77 = vld [vmem:[#allocation5 + $0x30] sm:$0xf]
    %v78 = vld [vmem:[#allocation5 + $0x34] sm:$0xf]
    %v79 = vld [vmem:[#allocation5 + $0x38] sm:$0xf]
    %v80 = vld [vmem:[#allocation5 + $0x3c] sm:$0xf]
    %v81 = vld [vmem:[%s2] sm:$0x1]
    %v83 = vlaneseq
    %v84 = vshrl.u32 %v83, 7
    %v85 = vsub.s32 0, %v84
    %v86 = vrot.slane %v81, %v85
    %v90 = vunpack.c.l.b16 %v63
    %v91 = vunpack.c.l.b16 %v64
    %v92 = vpack.c.b16 %v91, %v90
    %v110 = vunpack.c.l.b16 %v65
    %v111 = vunpack.c.l.b16 %v66
    %v112 = vunpack.c.l.b16 %v67
    %v113 = vunpack.c.l.b16 %v68
    %v114 = vunpack.c.l.b16 %v69
    %v115 = vunpack.c.l.b16 %v70
    %v116 = vunpack.c.l.b16 %v71
    %v117 = vunpack.c.l.b16 %v72
    %v118 = vunpack.c.l.b16 %v73
    %v119 = vunpack.c.l.b16 %v74
    %v120 = vunpack.c.l.b16 %v75
    %v121 = vunpack.c.l.b16 %v76
    %v122 = vunpack.c.l.b16 %v77
    %v123 = vunpack.c.l.b16 %v78
    %v124 = vunpack.c.l.b16 %v79
    %v125 = vunpack.c.l.b16 %v80
    %v126 = vpack.c.b16 %v111, %v110
    %v127 = vpack.c.b16 %v113, %v112
    %v128 = vpack.c.b16 %v115, %v114
    %v129 = vpack.c.b16 %v117, %v116
    %v130 = vpack.c.b16 %v119, %v118
    %v131 = vpack.c.b16 %v121, %v120
    %v132 = vpack.c.b16 %v123, %v122
    %v133 = vpack.c.b16 %v125, %v124
    %142 = vmatprep.subr.bf16.mxu0 0
    %143 = vmatpush1.bf16.msra.mxu0 %v126
    %144 = vmatprep.subr.bf16.mxu0 0
    %145 = vmatpush1.bf16.msra.mxu0 %v127
    %146 = vmatprep.subr.bf16.mxu0 0
    %147 = vmatpush1.bf16.msra.mxu0 %v128
    %148 = vmatprep.subr.bf16.mxu0 0
    %149 = vmatpush1.bf16.msra.mxu0 %v129
    %150 = vmatprep.subr.bf16.mxu0 0
    %151 = vmatpush1.bf16.msra.mxu0 %v130
    %152 = vmatprep.subr.bf16.mxu0 0
    %153 = vmatpush1.bf16.msra.mxu0 %v131
    %154 = vmatprep.subr.bf16.mxu0 0
    %155 = vmatpush1.bf16.msra.mxu0 %v132
    %156 = vmatprep.subr.bf16.mxu0 0
    %157 = vmatpush1.bf16.msra.mxu0 %v133
    %158 = vmatprep.subr.bf16.mxu0 0
    %159 = vmatpush1.bf16.msra.mxu0 0
    %160 = vmatprep.subr.bf16.mxu0 0
    %161 = vmatpush1.bf16.msra.mxu0 0
    %162 = vmatprep.subr.bf16.mxu0 0
    %163 = vmatpush1.bf16.msra.mxu0 0
    %164 = vmatprep.subr.bf16.mxu0 0
    %165 = vmatpush1.bf16.msra.mxu0 0
    %166 = vmatprep.subr.bf16.mxu0 0
    %167 = vmatpush1.bf16.msra.mxu0 0
    %168 = vmatprep.subr.bf16.mxu0 0
    %169 = vmatpush1.bf16.msra.mxu0 0
    %170 = vmatprep.subr.bf16.mxu0 0
    %171 = vmatpush1.bf16.msra.mxu0 0
    %172 = vmatprep.subr.bf16.mxu0 0
    %173 = vmatpush1.bf16.msra.mxu0 0
    %174 = vmatprep.mubr.bf16.mxu0 0
    %175 = vmatmul.mubr.bf16.gmra.mrb[0].mxu0 %v92
    %v176 = vpop.f32.mrb[0].mxu0
    %v177 = vadd.f32 %v86, %v176
    %v178 = vpop.f32.mrb[0].mxu0
    %v179 = vpop.f32.mrb[0].mxu0
    %v180 = vadd.f32 %v86, %v179
    %v181 = vpop.f32.mrb[0].mxu0
    %182 = vdwg.mxu0
    %v183 = vmul.f32 %v177, %v177
    %v184 = vmul.f32 %v180, %v180
    %v185 = vmul.f32 %v177, %v183
    %v186 = vmul.f32 %v180, %v184
    %v187 = vmul.f32 %v185, 0.044715
    %v188 = vmul.f32 %v186, 0.044715
    %v189 = vadd.f32 %v177, %v187
    %v190 = vadd.f32 %v180, %v188
    %v191 = vmul.f32 %v189, 0.7978846
    %v192 = vmul.f32 %v190, 0.7978846
    %v193 = vtanh.pop %v191
    %v194 = vtanh.pop %v192
    %v195 = vadd.f32 %v193, 1.0
    %v196 = vadd.f32 %v194, 1.0
    %v197 = vmul.f32 %v195, 0.5
    %v198 = vmul.f32 %v196, 0.5
    %v199 = vmul.f32 %v177, %v197
    %v200 = vmul.f32 %v180, %v198
    %v201 = vpack.c.bf16 %v200, %v199
    %v202 = vld [vmem:[#allocation7] sm:$0xf]
    %v203 = vld [vmem:[#allocation7 + $0x4] sm:$0xf]
    %v204 = vld [vmem:[#allocation7 + $0x8] sm:$0xf]
    %v205 = vld [vmem:[#allocation7 + $0xc] sm:$0xf]
    %v206 = vld [vmem:[#allocation7 + $0x10] sm:$0xf]
    %v207 = vld [vmem:[#allocation7 + $0x14] sm:$0xf]
    %v208 = vld [vmem:[#allocation7 + $0x18] sm:$0xf]
    %v209 = vld [vmem:[#allocation7 + $0x1c] sm:$0xf]
    %v210 = vld [vmem:[#allocation7 + $0x20] sm:$0xf]
    %v211 = vld [vmem:[#allocation7 + $0x24] sm:$0xf]
    %v212 = vld [vmem:[#allocation7 + $0x28] sm:$0xf]
    %v213 = vld [vmem:[#allocation7 + $0x2c] sm:$0xf]
    %v214 = vld [vmem:[#allocation7 + $0x30] sm:$0xf]
    %v215 = vld [vmem:[#allocation7 + $0x34] sm:$0xf]
    %v216 = vld [vmem:[#allocation7 + $0x38] sm:$0xf]
    %v217 = vld [vmem:[#allocation7 + $0x3c] sm:$0xf]
    %v218 = vld [vmem:[%s4] sm:$0x1]
    %v220 = vlaneseq
    %v221 = vshrl.u32 %v220, 7
    %v222 = vsub.s32 0, %v221
    %v223 = vrot.slane %v218, %v222
    %v241 = vunpack.c.l.b16 %v202
    %v242 = vunpack.c.l.b16 %v203
    %v243 = vunpack.c.l.b16 %v204
    %v244 = vunpack.c.l.b16 %v205
    %v245 = vunpack.c.l.b16 %v206
    %v246 = vunpack.c.l.b16 %v207
    %v247 = vunpack.c.l.b16 %v208
    %v248 = vunpack.c.l.b16 %v209
    %v249 = vunpack.c.l.b16 %v210
    %v250 = vunpack.c.l.b16 %v211
    %v251 = vunpack.c.l.b16 %v212
    %v252 = vunpack.c.l.b16 %v213
    %v253 = vunpack.c.l.b16 %v214
    %v254 = vunpack.c.l.b16 %v215
    %v255 = vunpack.c.l.b16 %v216
    %v256 = vunpack.c.l.b16 %v217
    %v257 = vpack.c.b16 %v242, %v241
    %v258 = vpack.c.b16 %v244, %v243
    %v259 = vpack.c.b16 %v246, %v245
    %v260 = vpack.c.b16 %v248, %v247
    %v261 = vpack.c.b16 %v250, %v249
    %v262 = vpack.c.b16 %v252, %v251
    %v263 = vpack.c.b16 %v254, %v253
    %v264 = vpack.c.b16 %v256, %v255
    %273 = vmatprep.subr.bf16.mxu0 0
    %274 = vmatpush1.bf16.msra.mxu0 %v257
    %275 = vmatprep.subr.bf16.mxu0 0
    %276 = vmatpush1.bf16.msra.mxu0 %v258
    %277 = vmatprep.subr.bf16.mxu0 0
    %278 = vmatpush1.bf16.msra.mxu0 %v259
    %279 = vmatprep.subr.bf16.mxu0 0
    %280 = vmatpush1.bf16.msra.mxu0 %v260
    %281 = vmatprep.subr.bf16.mxu0 0
    %282 = vmatpush1.bf16.msra.mxu0 %v261
    %283 = vmatprep.subr.bf16.mxu0 0
    %284 = vmatpush1.bf16.msra.mxu0 %v262
    %285 = vmatprep.subr.bf16.mxu0 0
    %286 = vmatpush1.bf16.msra.mxu0 %v263
    %287 = vmatprep.subr.bf16.mxu0 0
    %288 = vmatpush1.bf16.msra.mxu0 %v264
    %289 = vmatprep.subr.bf16.mxu0 0
    %290 = vmatpush1.bf16.msra.mxu0 0
    %291 = vmatprep.subr.bf16.mxu0 0
    %292 = vmatpush1.bf16.msra.mxu0 0
    %293 = vmatprep.subr.bf16.mxu0 0
    %294 = vmatpush1.bf16.msra.mxu0 0
    %295 = vmatprep.subr.bf16.mxu0 0
    %296 = vmatpush1.bf16.msra.mxu0 0
    %297 = vmatprep.subr.bf16.mxu0 0
    %298 = vmatpush1.bf16.msra.mxu0 0
    %299 = vmatprep.subr.bf16.mxu0 0
    %300 = vmatpush1.bf16.msra.mxu0 0
    %301 = vmatprep.subr.bf16.mxu0 0
    %302 = vmatpush1.bf16.msra.mxu0 0
    %303 = vmatprep.subr.bf16.mxu0 0
    %304 = vmatpush1.bf16.msra.mxu0 0
    %305 = vmatprep.mubr.bf16.mxu0 0
    %306 = vmatmul.mubr.bf16.gmra.mrb[0].mxu0 %v201
    %v307 = vpop.f32.mrb[0].mxu0
    %v308 = vadd.f32 %v223, %v307
    %v309 = vpop.f32.mrb[0].mxu0
    %v310 = vpop.f32.mrb[0].mxu0
    %v311 = vadd.f32 %v223, %v310
    %v312 = vpop.f32.mrb[0].mxu0
    %313 = vdwg.mxu0
    %314 = vst [vmem:[#allocation8] sm:$0xff] %v308
    %315 = vst [vmem:[#allocation8 + $0x8] sm:$0xff] %v311
    // Predicated region
    $region34: #{tpu_custom_call.1} parent=1 // pred_check
      _
    $region35: #{tpu_custom_call.1} parent=1 // pred_check_branch
      %317 = sbr.rel (0) target = $region37
    $region36: #{tpu_custom_call.1} parent=1 // pred_region
      %s319 = ssub.s32 256, 256
      %320 = vsyncadd [#allocation4], %s319
      %s321 = sshll.u32 [#allocation8], 4
      %s322 = int_to_ptr.vmem [resolvable:$true] %s321
      %327 = dma.vmem_to_hbm [thread:$0]  %s322, 256, %s5, [#allocation4], 128, 128, 8
    $region37: #{tpu_custom_call.1} parent=1 // pred_fallthru
      _
    // Predicated region
    $region38: #{tpu_custom_call.1} parent=1 // pred_check
      _
    $region39: #{tpu_custom_call.1} parent=1 // pred_check_branch
      %329 = sbr.rel (0) target = $region41
    $region40: #{tpu_custom_call.1} parent=1 // pred_region
      %330 = dma.done [#allocation4], 256
    $region41: #{tpu_custom_call.1} parent=1 // pred_fallthru
      _
    %331 = vsyncpa [#allocation3], 1
    %332 = vsyncpa [#allocation6], 1
    %333 = vsyncpa [#allocation4], 1

</llo_original>
